<compile_context>
chip_gen: v5e
topology: v5e:2x2
jax: 0.10.0
libtpu: 0.0.40
codegen_flags: <defaults>
</compile_context>

<pallas_src>
import functools

import jax
import jax.numpy as jnp
from jax import lax
from jax.experimental import pallas as pl
from jax.experimental.pallas import tpu as pltpu


def _round_up(x, m):
    return ((x + m - 1) // m) * m


def _cluster_loss_kernel(num_labels, seg, n_valid, feat_ref, cent_ref, lab_ref,
                         out_ref):
    f = feat_ref[...]                                      # [TN, Daug] f32
    ca = cent_ref[...]                                     # [Daug, Cpad]
    tn = f.shape[0]

    # One MXU contraction gives  d2b = ||c||^2 (+BIG on empty/padded slots) - 2 x.c
    # because the feature tile carries a constant-1 column matched with the bias
    # row of the augmented centroid operand.
    d2b = lax.dot_general(f, ca, (((1,), (0,)), ((), ())),
                          preferred_element_type=jnp.float32)   # [TN, Cpad]
    # ||x||^2 over the real feature columns (the 1-column contributes exactly 1;
    # the zero alignment-pad columns contribute 0).
    f2 = jnp.sum(f * f, axis=1, keepdims=True) - 1.0            # [TN, 1]

    # Per-class min over contiguous 128-aligned lane segments (centroids are
    # label-sorted and padded per class). Lane groups are pre-folded with
    # elementwise minimum on the VPU so only one cross-lane (XLU) reduce runs
    # per class; sqrt is deferred to the small [TN, L] result.
    cols = []
    for lab in range(num_labels):
        blk = d2b[:, lab * seg:(lab + 1) * seg]            # [TN, seg]
        m = blk[:, 0:128]
        for g in range(1, seg // 128):
            m = jnp.minimum(m, blk[:, g * 128:(g + 1) * 128])
        cols.append(jnp.min(m, axis=1, keepdims=True))
    dmin = jnp.concatenate(cols, axis=1)                   # [TN, L]
    dist = jnp.sqrt(jnp.maximum(dmin + f2, 0.0))           # [TN, L]

    # F.normalize(p=1, dim=1): distances are nonnegative so |.| == identity.
    l1 = jnp.maximum(jnp.sum(dist, axis=1, keepdims=True), jnp.float32(1e-12))
    dn = dist * pl.reciprocal(l1, approx=True)             # [TN, L]

    # Fused softmax + true-label gather + log:  nll = logsumexp(-dn) + dn[true]
    neg = -dn
    mx = jnp.max(neg, axis=1, keepdims=True)
    lse = mx + jnp.log(jnp.sum(jnp.exp(neg - mx), axis=1, keepdims=True))

    labs = lab_ref[...]                                    # [TN, 1] int32
    cls = lax.broadcasted_iota(jnp.int32, (tn, num_labels), 1)
    d_true = jnp.sum(jnp.where(cls == labs, dn, 0.0), axis=1, keepdims=True)

    # Batch-padding mask from the global row index (no streamed one-hot needed).
    row = pl.program_id(0) * tn + lax.broadcasted_iota(jnp.int32, (tn, 1), 0)
    valid = (row < n_valid).astype(jnp.float32)            # 0.0 on padded rows

    out_ref[0, 0] = jnp.sum((lse + d_true) * valid)        # SMEM scalar per tile


def compute_classification_loss(features, labels, centroids, centroid_labels,
                                num_labels, *, block_rows=1024,
                                max_per_class=None):
    """Pallas implementation of clusterLoss.compute_classification_loss."""
    n, d = features.shape
    if n == 0:
        return jnp.float32(0.0)
    c = centroids.shape[0]
    num_labels = int(num_labels)

    features = features.astype(jnp.float32)
    centroids = centroids.astype(jnp.float32)
    centroid_labels = centroid_labels.astype(jnp.int32)
    labels = labels.astype(jnp.int32)

    # ---- centroid-side prep (hoisted out of the kernel; cheap glue) ----
    # Per-class segment width from the *max per-class* centroid count (not the
    # total C), rounded to 128 so the [TN, Cpad] distance tile stays lane-dense
    # while Cpad = L*seg stays as small as possible. Must be static; computed
    # eagerly here (pass max_per_class explicitly when calling under jit).
    if max_per_class is None:
        counts_all = jnp.bincount(centroid_labels, length=num_labels)
        max_per_class = int(jnp.max(counts_all))
    max_per_class = max(int(max_per_class), 1)
    seg = _round_up(max_per_class, 128)
    cpad = num_labels * seg

    order = jnp.argsort(centroid_labels)
    cl = centroid_labels[order]
    cs = centroids[order]
    lab_range = jnp.arange(num_labels, dtype=jnp.int32)
    counts = jnp.sum(cl[None, :] == lab_range[:, None], axis=1)
    starts = jnp.cumsum(counts) - counts
    dest = cl * seg + (jnp.arange(c, dtype=jnp.int32) - starts[cl])

    cent_pad = jnp.zeros((cpad, d), jnp.float32).at[dest].set(cs)
    occupied = jnp.zeros((cpad,), jnp.float32).at[dest].set(1.0)
    big = jnp.float32(1e9)   # finite guard on empty/padded slots (torch ref: inf)
    bias = jnp.sum(cent_pad * cent_pad, axis=1) + (1.0 - occupied) * big

    # Augmented, pre-transposed centroid operand [Daug, Cpad]:
    #   rows 0..D-1 = -2*c^T, row D = bias, rows D+1.. = 0 (sublane alignment).
    daug = _round_up(d + 1, 8)
    c_aug = jnp.zeros((daug, cpad), jnp.float32)
    c_aug = c_aug.at[:d, :].set(-2.0 * cent_pad.T)
    c_aug = c_aug.at[d, :].set(bias)

    # Features with a constant-1 column matching the bias row (zero alignment pad).
    feat_aug = jnp.zeros((n, daug), jnp.float32)
    feat_aug = feat_aug.at[:, :d].set(features)
    feat_aug = feat_aug.at[:, d].set(1.0)

    # ---- row tiling (pipelined over the batch) ----
    tn = min(block_rows, _round_up(n, 8))
    # Prefer >= 2 grid steps so v7x's two TensorCores both get work on the
    # "parallel" axis (harmless on single-TC v5e/v6e).
    if _round_up(n, tn) // tn < 2 and n >= 16:
        tn = _round_up((n + 1) // 2, 8)
    npad = _round_up(n, tn)
    num_tiles = npad // tn
    feat_p = jnp.pad(feat_aug, ((0, npad - n), (0, 0)))    # all-zero rows = padding
    lab_p = jnp.pad(labels[:, None], ((0, npad - n), (0, 0)))

    # VMEM budget: ~3/4 of physical per-core VMEM (~96 MiB on 128 MiB v5e/v6e,
    # ~48 MiB on 64 MiB v7x), capped at 100 MiB; conservative fallback otherwise.
    try:
        vmem_phys = int(pltpu.get_tpu_info().vmem_capacity_bytes)
    except Exception:
        vmem_phys = 64 * 1024 * 1024
    vmem_limit = min((vmem_phys * 3) // 4, 100 * 1024 * 1024)

    kernel = functools.partial(_cluster_loss_kernel, num_labels, seg, n)
    partials = pl.pallas_call(
        kernel,
        out_shape=jax.ShapeDtypeStruct((num_tiles, 1), jnp.float32),
        grid=(num_tiles,),
        in_specs=[
            pl.BlockSpec((tn, daug), lambda i: (i, 0)),    # streamed features(+1 col)
            pl.BlockSpec((daug, cpad), lambda i: (0, 0)),  # resident centroids+bias
            pl.BlockSpec((tn, 1), lambda i: (i, 0)),       # streamed int32 labels
        ],
        out_specs=pl.BlockSpec((1, 1), lambda i: (i, 0),
                               memory_space=pltpu.SMEM),   # scalar partial per tile
        compiler_params=pltpu.CompilerParams(
            # Independent per-tile partial sums -> v7x shards tiles across both
            # TensorCores; harmless on v5e/v6e.
            dimension_semantics=("parallel",),
            vmem_limit_bytes=vmem_limit,
        ),
    )(feat_p, c_aug, lab_p)

    return jnp.sum(partials) / jnp.float32(n)


def cluster_loss_forward(features, labels, gb_centroids, gb_radii, gb_labels,
                         num_labels):
    """Mirror of clusterLoss.forward given pre-computed granular-ball outputs."""
    gb_centroids = gb_centroids.astype(jnp.float32)
    gb_radii = gb_radii.astype(jnp.float32)
    gb_labels = gb_labels.astype(jnp.int32)

    sorted_idx = jnp.argsort(gb_labels)          # glue (same as torch.argsort)
    gb_centroids = gb_centroids[sorted_idx]
    gb_radii = gb_radii[sorted_idx]
    gb_labels = gb_labels[sorted_idx]

    loss = compute_classification_loss(features, labels, gb_centroids, gb_labels,
                                       num_labels)
    return gb_centroids, gb_radii, gb_labels, loss


def _reference_loss(features, labels, centroids, centroid_labels, num_labels):
    """Pure-JAX reference mirroring the torch code (for verification)."""
    f = features.astype(jnp.float32)
    c = centroids.astype(jnp.float32)
    f2 = jnp.sum(f * f, axis=1, keepdims=True)
    c2 = jnp.sum(c * c, axis=1)[None, :]
    xc = lax.dot_general(f, c, (((1,), (1,)), ((), ())),
                         preferred_element_type=jnp.float32,
                         precision=lax.Precision.HIGHEST)
    logits = jnp.sqrt(jnp.maximum(f2 + c2 - 2.0 * xc, 0.0))
    cols = []
    for lab in range(num_labels):
        m = centroid_labels == lab
        cols.append(jnp.min(jnp.where(m[None, :], logits, jnp.inf),
                            axis=1, keepdims=True))
    dists = jnp.concatenate(cols, axis=1)
    dists = dists / jnp.maximum(jnp.sum(jnp.abs(dists), axis=1, keepdims=True),
                                1e-12)
    p = jax.nn.softmax(-dists, axis=1)
    tp = p[jnp.arange(p.shape[0]), labels]
    return jnp.mean(-jnp.log(tp))


if __name__ == "__main__":
    key = jax.random.PRNGKey(0)
    k_feat, k_lab, k_cent, k_rad, k_perm = jax.random.split(key, 5)

    N, D = 8, 32            # batch, feat_dim
    num_labels = 4          # data.num_labels
    C = 16                  # number of granular-ball centroids (4 per class)

    features = jax.random.normal(k_feat, (N, D), dtype=jnp.float32)
    labels = jax.random.randint(k_lab, (N,), 0, num_labels, dtype=jnp.int32)

    # Deterministic synthetic stand-ins for gbcluster outputs.
    gb_centroids = jax.random.normal(k_cent, (C, D), dtype=jnp.float32)
    gb_radii = jax.random.uniform(k_rad, (C,), dtype=jnp.float32)
    gb_labels = jax.random.permutation(k_perm,
                                       jnp.arange(C, dtype=jnp.int32) % num_labels)

    cents, radii, clabels, loss = cluster_loss_forward(
        features, labels, gb_centroids, gb_radii, gb_labels, num_labels)
    loss = jax.block_until_ready(loss)

    ref = _reference_loss(features, labels, cents, clabels, num_labels)
    assert jnp.isfinite(loss), "loss is not finite"
    assert jnp.allclose(loss, ref, rtol=1e-3, atol=1e-3), (loss, ref)

    print("KERNEL_OK")
</pallas_src>

<mosaic_0001>
module attributes {stable_mosaic.version = 11 : i64} {
  func.func @_cluster_loss_kernel(%arg0: i32, %arg1: memref<8x40xf32, #tpu.memory_space<vmem>>, %arg2: memref<40x512xf32, #tpu.memory_space<vmem>>, %arg3: memref<8x1xi32, #tpu.memory_space<vmem>>, %arg4: memref<1x1xf32, #tpu.memory_space<smem>>) attributes {dimension_semantics = [#tpu.dimension_semantics<parallel>], iteration_bounds = array<i64: 1>, scalar_prefetch = 0 : i64, scratch_operands = 0 : i64, tpu.core_type = #tpu.core_type<tc>, window_params = [{transform_indices = @transform_0, window_bounds = array<i64: 8, 40>}, {pipeline_mode = #tpu.pipeline_mode<synchronous>, transform_indices = @transform_1, window_bounds = array<i64: 40, 512>}, {transform_indices = @transform_2, window_bounds = array<i64: 8, 1>}, {transform_indices = @transform_3, window_bounds = array<i64: 1, 1>}]} {
    %c0 = arith.constant 0 : index
    %c0_0 = arith.constant 0 : index
    %0 = vector.load %arg1[%c0, %c0_0] : memref<8x40xf32, #tpu.memory_space<vmem>>, vector<8x40xf32>
    %c0_1 = arith.constant 0 : index
    %c0_2 = arith.constant 0 : index
    %1 = vector.load %arg2[%c0_1, %c0_2] : memref<40x512xf32, #tpu.memory_space<vmem>>, vector<40x512xf32>
    %cst = arith.constant dense<0.000000e+00> : vector<8x512xf32>
    %2 = tpu.matmul %0, %1, %cst {dimension_numbers = #tpu.dot_dimension_numbers<[1], [0], [0], [1], [0, 0, 1, 1], [], []>} : vector<8x40xf32>, vector<40x512xf32>, vector<8x512xf32> -> vector<8x512xf32>
    %3 = arith.mulf %0, %0 : vector<8x40xf32>
    %cst_3 = arith.constant dense<0.000000e+00> : vector<8xf32>
    %4 = vector.multi_reduction <add>, %3, %cst_3 [1] : vector<8x40xf32> to vector<8xf32>
    %5 = vector.shape_cast %4 : vector<8xf32> to vector<8x1xf32>
    %cst_4 = arith.constant 1.000000e+00 : f32
    %6 = vector.broadcast %cst_4 : f32 to vector<8x1xf32>
    %7 = arith.subf %5, %6 : vector<8x1xf32>
    %8 = vector.extract_strided_slice %2 {offsets = [0, 0], sizes = [8, 128], strides = [1, 1]} : vector<8x512xf32> to vector<8x128xf32>
    %cst_5 = arith.constant dense<0x7F800000> : vector<8xf32>
    %9 = vector.multi_reduction <minimumf>, %8, %cst_5 [1] : vector<8x128xf32> to vector<8xf32>
    %10 = vector.shape_cast %9 : vector<8xf32> to vector<8x1xf32>
    %11 = vector.extract_strided_slice %2 {offsets = [0, 128], sizes = [8, 128], strides = [1, 1]} : vector<8x512xf32> to vector<8x128xf32>
    %cst_6 = arith.constant dense<0x7F800000> : vector<8xf32>
    %12 = vector.multi_reduction <minimumf>, %11, %cst_6 [1] : vector<8x128xf32> to vector<8xf32>
    %13 = vector.shape_cast %12 : vector<8xf32> to vector<8x1xf32>
    %14 = vector.extract_strided_slice %2 {offsets = [0, 256], sizes = [8, 128], strides = [1, 1]} : vector<8x512xf32> to vector<8x128xf32>
    %cst_7 = arith.constant dense<0x7F800000> : vector<8xf32>
    %15 = vector.multi_reduction <minimumf>, %14, %cst_7 [1] : vector<8x128xf32> to vector<8xf32>
    %16 = vector.shape_cast %15 : vector<8xf32> to vector<8x1xf32>
    %17 = vector.extract_strided_slice %2 {offsets = [0, 384], sizes = [8, 128], strides = [1, 1]} : vector<8x512xf32> to vector<8x128xf32>
    %cst_8 = arith.constant dense<0x7F800000> : vector<8xf32>
    %18 = vector.multi_reduction <minimumf>, %17, %cst_8 [1] : vector<8x128xf32> to vector<8xf32>
    %19 = vector.shape_cast %18 : vector<8xf32> to vector<8x1xf32>
    %20 = tpu.concatenate %10, %13, %16, %19 in 1 : vector<8x1xf32>, vector<8x1xf32>, vector<8x1xf32>, vector<8x1xf32> -> vector<8x4xf32>
    %21 = vector.broadcast %7 : vector<8x1xf32> to vector<8x4xf32>
    %22 = arith.addf %20, %21 : vector<8x4xf32>
    %cst_9 = arith.constant 0.000000e+00 : f32
    %23 = vector.broadcast %cst_9 : f32 to vector<8x4xf32>
    %24 = arith.maximumf %22, %23 : vector<8x4xf32>
    %25 = math.sqrt %24 : vector<8x4xf32>
    %cst_10 = arith.constant dense<0.000000e+00> : vector<8xf32>
    %26 = vector.multi_reduction <add>, %25, %cst_10 [1] : vector<8x4xf32> to vector<8xf32>
    %27 = vector.shape_cast %26 : vector<8xf32> to vector<8x1xf32>
    %cst_11 = arith.constant 9.99999996E-13 : f32
    %28 = vector.broadcast %cst_11 : f32 to vector<8x1xf32>
    %29 = arith.maximumf %27, %28 : vector<8x1xf32>
    %30 = tpu.reciprocal %29 {approx = true} : vector<8x1xf32> -> vector<8x1xf32>
    %31 = vector.broadcast %30 : vector<8x1xf32> to vector<8x4xf32>
    %32 = arith.mulf %25, %31 : vector<8x4xf32>
    %cst_12 = arith.constant 0.000000e+00 : f32
    %33 = vector.broadcast %cst_12 : f32 to vector<8x4xf32>
    %34 = arith.subf %33, %32 : vector<8x4xf32>
    %cst_13 = arith.constant dense<0xFF800000> : vector<8xf32>
    %35 = vector.multi_reduction <maximumf>, %34, %cst_13 [1] : vector<8x4xf32> to vector<8xf32>
    %36 = vector.shape_cast %35 : vector<8xf32> to vector<8x1xf32>
    %37 = vector.broadcast %36 : vector<8x1xf32> to vector<8x4xf32>
    %38 = arith.subf %34, %37 : vector<8x4xf32>
    %39 = math.exp %38 : vector<8x4xf32>
    %cst_14 = arith.constant dense<0.000000e+00> : vector<8xf32>
    %40 = vector.multi_reduction <add>, %39, %cst_14 [1] : vector<8x4xf32> to vector<8xf32>
    %41 = vector.shape_cast %40 : vector<8xf32> to vector<8x1xf32>
    %42 = math.log %41 : vector<8x1xf32>
    %43 = arith.addf %36, %42 : vector<8x1xf32>
    %c0_15 = arith.constant 0 : index
    %c0_16 = arith.constant 0 : index
    %44 = vector.load %arg3[%c0_15, %c0_16] : memref<8x1xi32, #tpu.memory_space<vmem>>, vector<8x1xi32>
    %45 = tpu.iota {dimensions = array<i32: 1>} : vector<8x4xi32>
    %46 = vector.broadcast %44 : vector<8x1xi32> to vector<8x4xi32>
    %47 = arith.cmpi eq, %45, %46 : vector<8x4xi32>
    %cst_17 = arith.constant 0.000000e+00 : f32
    %48 = vector.broadcast %cst_17 : f32 to vector<8x4xf32>
    %49 = arith.select %47, %32, %48 : vector<8x4xi1>, vector<8x4xf32>
    %cst_18 = arith.constant dense<0.000000e+00> : vector<8xf32>
    %50 = vector.multi_reduction <add>, %49, %cst_18 [1] : vector<8x4xf32> to vector<8xf32>
    %51 = vector.shape_cast %50 : vector<8xf32> to vector<8x1xf32>
    %c8_i32 = arith.constant 8 : i32
    %52 = arith.muli %arg0, %c8_i32 : i32
    %53 = tpu.iota {dimensions = array<i32: 0>} : vector<8x1xi32>
    %54 = vector.broadcast %52 : i32 to vector<8x1xi32>
    %55 = arith.addi %54, %53 : vector<8x1xi32>
    %c8_i32_19 = arith.constant 8 : i32
    %56 = vector.broadcast %c8_i32_19 : i32 to vector<8x1xi32>
    %57 = arith.cmpi slt, %55, %56 : vector<8x1xi32>
    %58 = arith.extui %57 : vector<8x1xi1> to vector<8x1xi32>
    %59 = arith.sitofp %58 : vector<8x1xi32> to vector<8x1xf32>
    %60 = arith.addf %43, %51 : vector<8x1xf32>
    %61 = arith.mulf %60, %59 : vector<8x1xf32>
    %62 = vector.shape_cast %61 : vector<8x1xf32> to vector<1x8x1xf32>
    %cst_20 = arith.constant dense<0.000000e+00> : vector<1xf32>
    %63 = vector.multi_reduction <add>, %62, %cst_20 [1, 2] : vector<1x8x1xf32> to vector<1xf32>
    %64 = vector.shape_cast %63 : vector<1xf32> to vector<1x1x1xf32>
    %65 = vector.extract %64[0, 0, 0] : f32 from vector<1x1x1xf32>
    %c0_21 = arith.constant 0 : index
    %c0_22 = arith.constant 0 : index
    %66 = memref.load %arg4[%c0_21, %c0_22] : memref<1x1xf32, #tpu.memory_space<smem>>
    memref.store %65, %arg4[%c0_21, %c0_22] : memref<1x1xf32, #tpu.memory_space<smem>>
    return
  }
  func.func @transform_0(%arg0: i32) -> (i32, i32) {
    %c0_i32 = arith.constant 0 : i32
    %c0_i32_0 = arith.constant 0 : i32
    return %arg0, %c0_i32 : i32, i32
  }
  func.func @transform_1(%arg0: i32) -> (i32, i32) {
    %c0_i32 = arith.constant 0 : i32
    %c0_i32_0 = arith.constant 0 : i32
    %c0_i32_1 = arith.constant 0 : i32
    return %c0_i32, %c0_i32_0 : i32, i32
  }
  func.func @transform_2(%arg0: i32) -> (i32, i32) {
    %c0_i32 = arith.constant 0 : i32
    %c0_i32_0 = arith.constant 0 : i32
    return %arg0, %c0_i32 : i32, i32
  }
  func.func @transform_3(%arg0: i32) -> (i32, i32) {
    %c0_i32 = arith.constant 0 : i32
    %c0_i32_0 = arith.constant 0 : i32
    return %arg0, %c0_i32 : i32, i32
  }
}

</mosaic_0001>

<llo_original>
// kernel: tpu_custom_call.1
$region0: #{tpu_custom_call.1}
  #allocation0 [shape = 'u32[]', space=smem, size = 0x4, offset = 0x4, fixed_abs, tag = 'smem constant byte address 0x4 - core index']
  #allocation1 [shape = 'u32[72,128]{1,0:T(1,128)}', space=vmem, size = 0x9000, scoped, tag = 'internal scratch']
  %s0 = inlined_call_operand.vmem [shape: f32[8,40], index: 0, kind: input, shape index: {}]
  %s1 = inlined_call_operand.hbm [shape: f32[40,512], index: 1, kind: input, shape index: {}]
  %s2 = inlined_call_operand.vmem [shape: s32[8,1], index: 2, kind: input, shape index: {}]
  %s3 = inlined_call_operand.hbm [shape: f32[1,1], index: 3, kind: output, shape index: {}]
  %s4 = sld [smem:[#allocation0]]
  $region26: #{tpu_custom_call.1} parent=0
    _
  %s6 = ssub.s32 1, %s4
  %s7 = scalar_select 0, %s6, %s4
  $region1: #{tpu_custom_call.1} parent=0
    #allocation2 [shape = 'u8[81920]{0}', space=vmem, size = 0x14000, scoped, tag = 'input window, operand 1, single buffered']
    #allocation3 [shape = 's32[1]{0}', space=sflag, size = 0x4, scoped, tag = 'scoped memory for tpu_custom_call.1']
    #allocation4 [shape = 's32[1]{0}', space=sflag, size = 0x4, scoped, tag = 'scoped memory for tpu_custom_call.1']
    #allocation5 [shape = 'u8[512]{0}', space=smem, size = 0x200, scoped, tag = 'output window, operand 0, single buffered']
    %8 = vsyncpa [#allocation3], 0
    %9 = vsyncpa [#allocation4], 0
    // Predicated region
    $region2: #{tpu_custom_call.1} parent=1 // pred_check
      _
    $region3: #{tpu_custom_call.1} parent=1 // pred_check_branch
      %11 = sbr.rel (0) target = $region5
    $region4: #{tpu_custom_call.1} parent=1 // pred_region
      _
    $region5: #{tpu_custom_call.1} parent=1 // pred_fallthru
      _
    // Predicated region
    $region6: #{tpu_custom_call.1} parent=1 // pred_check
      _
    $region7: #{tpu_custom_call.1} parent=1 // pred_check_branch
      %13 = sbr.rel (0) target = $region9
    $region8: #{tpu_custom_call.1} parent=1 // pred_region
      %15 = vsyncadd [#allocation3], 0
      %s16 = sshll.u32 %s1, 4
      %s17 = int_to_ptr.hbm [resolvable:$true] %s16
      %s18 = sshll.u32 [#allocation2], 4
      %s19 = int_to_ptr.vmem [resolvable:$true] %s18
      %24 = dma.hbm_to_vmem [thread:$0]  %s17, 2560, %s19, [#allocation3], 512, 512, 32
    $region9: #{tpu_custom_call.1} parent=1 // pred_fallthru
      _
    // Predicated region
    $region10: #{tpu_custom_call.1} parent=1 // pred_check
      _
    $region11: #{tpu_custom_call.1} parent=1 // pred_check_branch
      %26 = sbr.rel (0) target = $region13
    $region12: #{tpu_custom_call.1} parent=1 // pred_region
      _
    $region13: #{tpu_custom_call.1} parent=1 // pred_fallthru
      _
    // Predicated region
    $region14: #{tpu_custom_call.1} parent=1 // pred_check
      _
    $region15: #{tpu_custom_call.1} parent=1 // pred_check_branch
      %28 = sbr.rel (0) target = $region17
    $region16: #{tpu_custom_call.1} parent=1 // pred_region
      %30 = dma.done [#allocation3], 2560
    $region17: #{tpu_custom_call.1} parent=1 // pred_fallthru
      _
    %v31 = vld [vmem:[%s0] sm:$0xff]
    %v32 = vld [vmem:[#allocation2] sm:$0xff]
    %v33 = vld [vmem:[#allocation2 + $0x8] sm:$0xff]
    %v34 = vld [vmem:[#allocation2 + $0x10] sm:$0xff]
    %v35 = vld [vmem:[#allocation2 + $0x18] sm:$0xff]
    %v36 = vld [vmem:[#allocation2 + $0x20] sm:$0xff]
    %v37 = vld [vmem:[#allocation2 + $0x28] sm:$0xff]
    %v38 = vld [vmem:[#allocation2 + $0x30] sm:$0xff]
    %v39 = vld [vmem:[#allocation2 + $0x38] sm:$0xff]
    %v40 = vld [vmem:[#allocation2 + $0x40] sm:$0xff]
    %v41 = vld [vmem:[#allocation2 + $0x48] sm:$0xff]
    %v42 = vld [vmem:[#allocation2 + $0x50] sm:$0xff]
    %v43 = vld [vmem:[#allocation2 + $0x58] sm:$0xff]
    %v44 = vld [vmem:[#allocation2 + $0x60] sm:$0xff]
    %v45 = vld [vmem:[#allocation2 + $0x68] sm:$0xff]
    %v46 = vld [vmem:[#allocation2 + $0x70] sm:$0xff]
    %v47 = vld [vmem:[#allocation2 + $0x78] sm:$0xff]
    %v48 = vld [vmem:[#allocation2 + $0x80] sm:$0xff]
    %v49 = vld [vmem:[#allocation2 + $0x88] sm:$0xff]
    %v50 = vld [vmem:[#allocation2 + $0x90] sm:$0xff]
    %v51 = vld [vmem:[#allocation2 + $0x98] sm:$0xff]
    %vm52 = vcmask 326656
    %v54 = vsel %vm52, %v31, 0
    %56 = vmatpush.msra.mxu0 0.0
    %57 = vmatpush.msra.mxu0 0.0
    %58 = vmatpush.msra.mxu0 0.0
    %59 = vmatpush.msra.mxu0 0.0
    %60 = vmatpush.msra.mxu0 0.0
    %61 = vmatpush.msra.mxu0 0.0
    %62 = vmatpush.msra.mxu0 0.0
    %63 = vmatpush.msra.mxu0 0.0
    %64 = vmatpush.msra.mxu0 0.0
    %65 = vmatpush.msra.mxu0 0.0
    %66 = vmatpush.msra.mxu0 0.0
    %67 = vmatpush.msra.mxu0 %v48
    %68 = vmatpush.msra.mxu0 %v44
    %69 = vmatpush.msra.mxu0 %v40
    %70 = vmatpush.msra.mxu0 %v36
    %71 = vmatpush.msra.mxu0 %v32
    %72 = vmatmul.f32.gmra.mxu0 %v54
    %v73 = vpop.f32.mrf.mxu0
    %v74 = vadd.f32 0.0, %v73
    %75 = vdwg.mxu0
    %76 = vmatpush.msra.mxu0 0.0
    %77 = vmatpush.msra.mxu0 0.0
    %78 = vmatpush.msra.mxu0 0.0
    %79 = vmatpush.msra.mxu0 0.0
    %80 = vmatpush.msra.mxu0 0.0
    %81 = vmatpush.msra.mxu0 0.0
    %82 = vmatpush.msra.mxu0 0.0
    %83 = vmatpush.msra.mxu0 0.0
    %84 = vmatpush.msra.mxu0 0.0
    %85 = vmatpush.msra.mxu0 0.0
    %86 = vmatpush.msra.mxu0 0.0
    %87 = vmatpush.msra.mxu0 %v49
    %88 = vmatpush.msra.mxu0 %v45
    %89 = vmatpush.msra.mxu0 %v41
    %90 = vmatpush.msra.mxu0 %v37
    %91 = vmatpush.msra.mxu0 %v33
    %92 = vmatmul.f32.gmra.mxu0 %v54
    %v93 = vpop.f32.mrf.mxu0
    %v94 = vadd.f32 0.0, %v93
    %95 = vdwg.mxu0
    %96 = vmatpush.msra.mxu0 0.0
    %97 = vmatpush.msra.mxu0 0.0
    %98 = vmatpush.msra.mxu0 0.0
    %99 = vmatpush.msra.mxu0 0.0
    %100 = vmatpush.msra.mxu0 0.0
    %101 = vmatpush.msra.mxu0 0.0
    %102 = vmatpush.msra.mxu0 0.0
    %103 = vmatpush.msra.mxu0 0.0
    %104 = vmatpush.msra.mxu0 0.0
    %105 = vmatpush.msra.mxu0 0.0
    %106 = vmatpush.msra.mxu0 0.0
    %107 = vmatpush.msra.mxu0 %v50
    %108 = vmatpush.msra.mxu0 %v46
    %109 = vmatpush.msra.mxu0 %v42
    %110 = vmatpush.msra.mxu0 %v38
    %111 = vmatpush.msra.mxu0 %v34
    %112 = vmatmul.f32.gmra.mxu0 %v54
    %v113 = vpop.f32.mrf.mxu0
    %v114 = vadd.f32 0.0, %v113
    %115 = vdwg.mxu0
    %116 = vmatpush.msra.mxu0 0.0
    %117 = vmatpush.msra.mxu0 0.0
    %118 = vmatpush.msra.mxu0 0.0
    %119 = vmatpush.msra.mxu0 0.0
    %120 = vmatpush.msra.mxu0 0.0
    %121 = vmatpush.msra.mxu0 0.0
    %122 = vmatpush.msra.mxu0 0.0
    %123 = vmatpush.msra.mxu0 0.0
    %124 = vmatpush.msra.mxu0 0.0
    %125 = vmatpush.msra.mxu0 0.0
    %126 = vmatpush.msra.mxu0 0.0
    %127 = vmatpush.msra.mxu0 %v51
    %128 = vmatpush.msra.mxu0 %v47
    %129 = vmatpush.msra.mxu0 %v43
    %130 = vmatpush.msra.mxu0 %v39
    %131 = vmatpush.msra.mxu0 %v35
    %132 = vmatmul.f32.gmra.mxu0 %v54
    %v133 = vpop.f32.mrf.mxu0
    %v134 = vadd.f32 0.0, %v133
    %135 = vdwg.mxu0
    %v136 = vmul.f32 %v31, %v31
    %v137 = vsel %vm52, %v136, 0.0
    %138 = vadd.xlane.f32.xlu0 %v137
    %v139 = vpop.xlane.xlu0 %138
    %v140 = vsub.f32 %v139, 1.0
    %141 = vmin.xlane.f32.xlu0 %v74
    %v142 = vpop.xlane.xlu0 %141
    %143 = vmin.xlane.f32.xlu0 %v94
    %v144 = vpop.xlane.xlu0 %143
    %145 = vmin.xlane.f32.xlu0 %v114
    %v146 = vpop.xlane.xlu0 %145
    %147 = vmin.xlane.f32.xlu0 %v134
    %v148 = vpop.xlane.xlu0 %147
    %vm149 = vcmask 7168
    %v150 = vsel %vm149, %v142, %v144
    %vm151 = vcmask 15360
    %v152 = vsel %vm151, %v150, %v146
    %vm153 = vcmask 23552
    %v154 = vsel %vm153, %v152, %v148
    %v155 = vadd.f32 %v154, %v140
    %v156 = vmax.f32 %v155, 0.0
    %v157 = vrsqrt.pop %v156
    %v158 = vmul.f32 %v157, %v156
    %v159 = vmul.f32 %v158, %v157
    %v160 = vmul.f32 0.5, %v159
    %v161 = vsub.f32 1.5, %v160
    %v162 = vmul.f32 %v157, %v161
    %v163 = vmul.f32 %v156, %v162
    %vm164 = vcmp.eq.f32.partialorder %v156, inf
    %v165 = vsel %vm164, %v156, %v163
    %vm166 = vcmp.eq.f32.partialorder %v156, 0.0
    %v167 = vand.u32 %v156, 2147483648
    %v168 = vsel %vm166, %v167, %v165
    %vm169 = vcmask 31744
    %v170 = vsel %vm169, %v168, 0.0
    %171 = vadd.xlane.f32.xlu0 %v170
    %v172 = vpop.xlane.xlu0 %171
    %v173 = vmax.f32 %v172, 1e-12
    %v174 = vrcp.pop %v173
    %v175 = vmul.f32 %v168, %v174
    %v176 = vsub.f32 0.0, %v175
    %v177 = vsel %vm169, %v176, -inf
    %178 = vmax.xlane.f32.xlu0 %v177
    %v179 = vpop.xlane.xlu0 %178
    %v180 = vsub.f32 %v176, %v179
    %v181 = vmul.f32 %v180, 1.442695
    %v182 = vpow.pop %v181
    %v183 = vsel %vm169, %v182, 0.0
    %184 = vadd.xlane.f32.xlu0 %v183
    %v185 = vpop.xlane.xlu0 %184
    %v186 = vlog2.pop %v185
    %v187 = vmul.f32 %v186, 0.6931472
    %v188 = vadd.f32 %v179, %v187
    %v189 = vld [vmem:[%s2] sm:$0xff]
    %v190 = vlaneseq
    %v191 = vand.u32 %v190, 127
    %192 = vset.pattern.permute.xlu0 0
    %193 = vperm.xlu0 %192, %v189
    %v194 = vpop.permute.xlu0 %193
    %vm195 = vcmp.eq.s32.totalorder %v191, %v194
    %v196 = vsel %vm195, %v175, 0.0
    %v197 = vsel %vm169, %v196, 0.0
    %198 = vadd.xlane.f32.xlu0 %v197
    %v199 = vpop.xlane.xlu0 %198
    %s200 = smul.u32 0, 8
    %v201 = vlaneseq
    %v202 = vshrl.u32 %v201, 7
    %v203 = vstv %s200
    %v204 = vadd.s32 %v203, %v202
    %vm205 = vcmp.lt.s32.totalorder %v204, 8
    %v206 = vsel %vm205, 1, 0
    %v207 = vcvt.s32.f32 %v206
    %v208 = vadd.f32 %v188, %v199
    %v209 = vmul.f32 %v208, %v207
    %v210 = vsel %vm149, %v209, 0.0
    %211 = vadd.xlane.f32.xlu0 %v210
    %v212 = vpop.xlane.xlu0 %211
    %v213 = vrot.slane %v212, 4
    %v214 = vadd.f32 %v212, %v213
    %v215 = vrot.slane %v214, 2
    %v216 = vadd.f32 %v214, %v215
    %v217 = vrot.slane %v216, 1
    %v218 = vadd.f32 %v216, %v217
    %s219 = vtos %v218
    %s220 = scalar_lea.smem [#allocation5], 0
    %221 = sst [smem:[%s220]] %s219
    // Predicated region
    $region18: #{tpu_custom_call.1} parent=1 // pred_check
      _
    $region19: #{tpu_custom_call.1} parent=1 // pred_check_branch
      %223 = sbr.rel (0) target = $region21
    $region20: #{tpu_custom_call.1} parent=1 // pred_region
      %225 = vsyncadd [#allocation4], 0
      %s227 = sshll.u32 %s3, 4
      %s228 = int_to_ptr.hbm [resolvable:$true] %s227
      %230 = dma.smem_to_hbm [#allocation5], 16, %s228, [#allocation4]
    $region21: #{tpu_custom_call.1} parent=1 // pred_fallthru
      _
    // Predicated region
    $region22: #{tpu_custom_call.1} parent=1 // pred_check
      _
    $region23: #{tpu_custom_call.1} parent=1 // pred_check_branch
      %232 = sbr.rel (0) target = $region25
    $region24: #{tpu_custom_call.1} parent=1 // pred_region
      %234 = dma.done [#allocation4], 16
    $region25: #{tpu_custom_call.1} parent=1 // pred_fallthru
      _
    %235 = sfence
    %236 = vsyncpa [#allocation3], 1
    %237 = vsyncpa [#allocation4], 1

</llo_original>
